<compile_context>
chip_gen: v7x
topology: tpu7x:2x2x1
jax: 0.10.0
libtpu: 0.0.40
codegen_flags: <defaults>
</compile_context>

<pallas_src>
import jax
import jax.numpy as jnp
from jax.experimental import pallas as pl
from jax.experimental.pallas import tpu as pltpu


def _rhs_kernel(xT_ref, a_ref, h_ref, b_ref, oT_ref):
    """One lane-dense batch tile: out.T = A @ x.T + H @ kron(x,x).T + B."""
    xT = xT_ref[...]                      # (n, TB)  batch on lanes
    n, tb = xT.shape

    # kron(x, x).T : row i*n+j, column b  =  x[b, i] * x[b, j]
    # (n, 1, TB) * (1, n, TB) -> (n, n, TB) -> (n*n, TB); with n == sublane
    # tile this reshape is a pure vreg stack (no relayout).
    kronT = (xT[:, None, :] * xT[None, :, :]).reshape(n * n, tb)

    lin = jnp.dot(a_ref[...], xT, preferred_element_type=jnp.float32)       # (n, TB)
    quad = jnp.dot(h_ref[...], kronT, preferred_element_type=jnp.float32)   # (n, TB)

    # b_ref is (n, 1): broadcasts along the lane (batch) axis, no transpose.
    oT_ref[...] = (lin + quad + b_ref[...]).astype(oT_ref.dtype)


def _pick_batch_tile(batch):
    """Largest lane-dense tile (multiple of 128) dividing batch, else full batch."""
    for tb in (512, 256, 128):
        if batch % tb == 0:
            return tb
    return batch  # small / ragged batch: a single full-array block


def model_hypothesis_local_stable_forward(x, t, J, R, Q, B, H, *, B_term=True):
    """Wrapper matching ModelHypothesisLocalStable.forward(x, t)."""
    del t  # unused by the PyTorch forward
    batch, n = x.shape
    assert J.shape == (n, n) and R.shape == (n, n) and Q.shape == (n, n)
    assert B.shape == (n, 1) and H.shape == (n, n * n)

    # Stable A is x-independent: build it once per call outside the kernel.
    A = ((J - J.T) - jnp.dot(R, R.T)) @ jnp.dot(Q, Q.T)          # (n, n)
    bias = B if B_term else jnp.zeros_like(B)                    # (n, 1)

    # Lane-dense layout: batch on the last (lane) axis.
    xT = x.T                                                     # (n, batch)
    tb = _pick_batch_tile(batch)
    grid = (batch // tb,)

    outT = pl.pallas_call(
        _rhs_kernel,
        out_shape=jax.ShapeDtypeStruct((n, batch), jnp.float32),
        grid=grid,
        in_specs=[
            pl.BlockSpec((n, tb), lambda i: (0, i)),        # x.T, tiled over batch
            pl.BlockSpec((n, n), lambda i: (0, 0)),         # A, resident
            pl.BlockSpec((n, n * n), lambda i: (0, 0)),     # H, resident
            pl.BlockSpec((n, 1), lambda i: (0, 0)),         # bias column, resident
        ],
        out_specs=pl.BlockSpec((n, tb), lambda i: (0, i)),
        compiler_params=pltpu.CompilerParams(
            dimension_semantics=("parallel",)),
    )(xT, A, H, bias)

    return outT.T                                                # (batch, n)


def _reference_forward(x, J, R, Q, B, H):
    """Pure-JAX reference mirroring the PyTorch module."""
    A = ((J - J.T) - R @ R.T) @ (Q @ Q.T)
    kron_xx = (x[:, :, None] * x[:, None, :]).reshape(x.shape[0], -1)
    return x @ A.T + kron_xx @ H.T + B.T


if __name__ == "__main__":
    sys_order = 8     # n
    FAC = 10.0

    key = jax.random.PRNGKey(0)
    kJ, kR, kQ, kB, kH, kx1, kx2 = jax.random.split(key, 7)

    # Deterministic parameter init (shapes from __init__). B and H are zero in
    # the torch __init__; small random values are used here so the quadratic
    # and bias paths of the kernel are actually exercised.
    J = jax.random.normal(kJ, (sys_order, sys_order), jnp.float32) / FAC
    R = jax.random.normal(kR, (sys_order, sys_order), jnp.float32) / FAC
    Q = jax.random.normal(kQ, (sys_order, sys_order), jnp.float32) / FAC
    B = jax.random.normal(kB, (sys_order, 1), jnp.float32) / FAC
    H = jax.random.normal(kH, (sys_order, sys_order ** 2), jnp.float32) / FAC

    t = jnp.float32(0.0)  # unused, kept for API parity

    # Exercise both paths: small ragged batch (single full block) and a
    # lane-dense tiled batch (multiple of 128, grid > 1).
    for bkey, batch in ((kx1, 8), (kx2, 1024)):
        x = jax.random.normal(bkey, (batch, sys_order), jnp.float32)

        out = model_hypothesis_local_stable_forward(x, t, J, R, Q, B, H)
        out = jax.block_until_ready(out)

        ref = _reference_forward(x, J, R, Q, B, H)
        assert out.shape == (batch, sys_order)
        assert jnp.allclose(out, ref, atol=1e-5, rtol=1e-5), \
            f"mismatch vs reference at batch={batch}"

    print("KERNEL_OK")
</pallas_src>

<mosaic_0001>
module attributes {stable_mosaic.version = 11 : i64} {
  func.func @_rhs_kernel(%arg0: i32, %arg1: memref<8x8xf32, #tpu.memory_space<vmem>>, %arg2: memref<8x8xf32, #tpu.memory_space<vmem>>, %arg3: memref<8x64xf32, #tpu.memory_space<vmem>>, %arg4: memref<8x1xf32, #tpu.memory_space<vmem>>, %arg5: memref<8x8xf32, #tpu.memory_space<vmem>>) attributes {dimension_semantics = [#tpu.dimension_semantics<parallel>], iteration_bounds = array<i64: 1>, scalar_prefetch = 0 : i64, scratch_operands = 0 : i64, tpu.core_type = #tpu.core_type<tc>, window_params = [{transform_indices = @transform_0, window_bounds = array<i64: 8, 8>}, {pipeline_mode = #tpu.pipeline_mode<synchronous>, transform_indices = @transform_1, window_bounds = array<i64: 8, 8>}, {pipeline_mode = #tpu.pipeline_mode<synchronous>, transform_indices = @transform_2, window_bounds = array<i64: 8, 64>}, {pipeline_mode = #tpu.pipeline_mode<synchronous>, transform_indices = @transform_3, window_bounds = array<i64: 8, 1>}, {transform_indices = @transform_4, window_bounds = array<i64: 8, 8>}]} {
    %c0 = arith.constant 0 : index
    %c0_0 = arith.constant 0 : index
    %0 = vector.load %arg1[%c0, %c0_0] : memref<8x8xf32, #tpu.memory_space<vmem>>, vector<8x8xf32>
    %1 = vector.shape_cast %0 : vector<8x8xf32> to vector<8x1x8xf32>
    %2 = vector.shape_cast %0 : vector<8x8xf32> to vector<1x8x8xf32>
    %3 = vector.broadcast %1 : vector<8x1x8xf32> to vector<8x8x8xf32>
    %4 = vector.broadcast %2 : vector<1x8x8xf32> to vector<8x8x8xf32>
    %5 = arith.mulf %3, %4 : vector<8x8x8xf32>
    %6 = vector.shape_cast %5 : vector<8x8x8xf32> to vector<64x8xf32>
    %c0_1 = arith.constant 0 : index
    %c0_2 = arith.constant 0 : index
    %7 = vector.load %arg2[%c0_1, %c0_2] : memref<8x8xf32, #tpu.memory_space<vmem>>, vector<8x8xf32>
    %cst = arith.constant dense<0.000000e+00> : vector<8x8xf32>
    %8 = tpu.matmul %7, %0, %cst {dimension_numbers = #tpu.dot_dimension_numbers<[1], [0], [0], [1], [0, 0, 1, 1], [], []>} : vector<8x8xf32>, vector<8x8xf32>, vector<8x8xf32> -> vector<8x8xf32>
    %c0_3 = arith.constant 0 : index
    %c0_4 = arith.constant 0 : index
    %9 = vector.load %arg3[%c0_3, %c0_4] : memref<8x64xf32, #tpu.memory_space<vmem>>, vector<8x64xf32>
    %cst_5 = arith.constant dense<0.000000e+00> : vector<8x8xf32>
    %10 = tpu.matmul %9, %6, %cst_5 {dimension_numbers = #tpu.dot_dimension_numbers<[1], [0], [0], [1], [0, 0, 1, 1], [], []>} : vector<8x64xf32>, vector<64x8xf32>, vector<8x8xf32> -> vector<8x8xf32>
    %11 = arith.addf %8, %10 : vector<8x8xf32>
    %c0_6 = arith.constant 0 : index
    %c0_7 = arith.constant 0 : index
    %12 = vector.load %arg4[%c0_6, %c0_7] : memref<8x1xf32, #tpu.memory_space<vmem>>, vector<8x1xf32>
    %13 = vector.broadcast %12 : vector<8x1xf32> to vector<8x8xf32>
    %14 = arith.addf %11, %13 : vector<8x8xf32>
    %c0_8 = arith.constant 0 : index
    %c0_9 = arith.constant 0 : index
    %15 = vector.load %arg5[%c0_8, %c0_9] : memref<8x8xf32, #tpu.memory_space<vmem>>, vector<8x8xf32>
    tpu.vector_store %arg5[%c0_8, %c0_9], %14 {strides = array<i32>} : memref<8x8xf32, #tpu.memory_space<vmem>>, vector<8x8xf32>,
    return
  }
  func.func @transform_0(%arg0: i32) -> (i32, i32) {
    %c0_i32 = arith.constant 0 : i32
    %c0_i32_0 = arith.constant 0 : i32
    return %c0_i32, %arg0 : i32, i32
  }
  func.func @transform_1(%arg0: i32) -> (i32, i32) {
    %c0_i32 = arith.constant 0 : i32
    %c0_i32_0 = arith.constant 0 : i32
    %c0_i32_1 = arith.constant 0 : i32
    return %c0_i32, %c0_i32_0 : i32, i32
  }
  func.func @transform_2(%arg0: i32) -> (i32, i32) {
    %c0_i32 = arith.constant 0 : i32
    %c0_i32_0 = arith.constant 0 : i32
    %c0_i32_1 = arith.constant 0 : i32
    return %c0_i32, %c0_i32_0 : i32, i32
  }
  func.func @transform_3(%arg0: i32) -> (i32, i32) {
    %c0_i32 = arith.constant 0 : i32
    %c0_i32_0 = arith.constant 0 : i32
    %c0_i32_1 = arith.constant 0 : i32
    return %c0_i32, %c0_i32_0 : i32, i32
  }
  func.func @transform_4(%arg0: i32) -> (i32, i32) {
    %c0_i32 = arith.constant 0 : i32
    %c0_i32_0 = arith.constant 0 : i32
    return %c0_i32, %arg0 : i32, i32
  }
}

</mosaic_0001>

<llo_original>
// kernel: tpu_custom_call.1
$region0: #{tpu_custom_call.1}
  #allocation0 [shape = 'u32[]', space=smem, size = 0x4, offset = 0x4, fixed_abs, tag = 'smem constant byte address 0x4 - core index']
  #allocation1 [shape = 'u32[144,128]{1,0:T(1,128)}', space=vmem, size = 0x12000, scoped, tag = 'internal scratch']
  %s0 = inlined_call_operand.vmem [shape: f32[8,8], index: 0, kind: input, shape index: {}]
  %s1 = inlined_call_operand.hbm [shape: f32[8,8], index: 1, kind: input, shape index: {}]
  %s2 = inlined_call_operand.vmem [shape: f32[8,64], index: 2, kind: input, shape index: {}]
  %s3 = inlined_call_operand.vmem [shape: f32[8,1], index: 3, kind: input, shape index: {}]
  %s4 = inlined_call_operand.hbm [shape: f32[8,8], index: 4, kind: output, shape index: {}]
  %s5 = sld [smem:[#allocation0]]
  $region30: #{tpu_custom_call.1} parent=0
    _
  %s7 = ssub.s32 1, %s5
  %s8 = scalar_select 0, %s7, %s5
  $region1: #{tpu_custom_call.1} parent=0
    #allocation2 [shape = 'u8[4096]{0}', space=vmem, size = 0x1000, scoped, tag = 'input window, operand 1, single buffered']
    #allocation3 [shape = 's32[1]{0}', space=sflag, size = 0x4, scoped, tag = 'scoped memory for tpu_custom_call.1']
    #allocation4 [shape = 's32[1]{0}', space=sflag, size = 0x4, scoped, tag = 'scoped memory for tpu_custom_call.1']
    #allocation5 [shape = 'u8[4096]{0}', space=vmem, size = 0x1000, scoped, tag = 'output window, operand 0, single buffered']
    %9 = vsyncpa [#allocation3], 0
    %10 = vsyncpa [#allocation4], 0
    // Predicated region
    $region2: #{tpu_custom_call.1} parent=1 // pred_check
      _
    $region3: #{tpu_custom_call.1} parent=1 // pred_check_branch
      %12 = sbr.rel (0) target = $region5
    $region4: #{tpu_custom_call.1} parent=1 // pred_region
      _
    $region5: #{tpu_custom_call.1} parent=1 // pred_fallthru
      _
    // Predicated region
    $region6: #{tpu_custom_call.1} parent=1 // pred_check
      _
    $region7: #{tpu_custom_call.1} parent=1 // pred_check_branch
      %14 = sbr.rel (0) target = $region9
    $region8: #{tpu_custom_call.1} parent=1 // pred_region
      %s16 = ssub.s32 128, 128
      %17 = vsyncadd [#allocation3], %s16
      %s19 = sshll.u32 [#allocation2], 4
      %s20 = int_to_ptr.vmem [resolvable:$true] %s19
      %22 = dma.hbm_to_vmem [thread:$0]  %s1, 128, %s20, [#allocation3]
    $region9: #{tpu_custom_call.1} parent=1 // pred_fallthru
      _
    // Predicated region
    $region10: #{tpu_custom_call.1} parent=1 // pred_check
      _
    $region11: #{tpu_custom_call.1} parent=1 // pred_check_branch
      %24 = sbr.rel (0) target = $region13
    $region12: #{tpu_custom_call.1} parent=1 // pred_region
      _
    $region13: #{tpu_custom_call.1} parent=1 // pred_fallthru
      _
    // Predicated region
    $region14: #{tpu_custom_call.1} parent=1 // pred_check
      _
    $region15: #{tpu_custom_call.1} parent=1 // pred_check_branch
      %26 = sbr.rel (0) target = $region17
    $region16: #{tpu_custom_call.1} parent=1 // pred_region
      _
    $region17: #{tpu_custom_call.1} parent=1 // pred_fallthru
      _
    // Predicated region
    $region18: #{tpu_custom_call.1} parent=1 // pred_check
      _
    $region19: #{tpu_custom_call.1} parent=1 // pred_check_branch
      %28 = sbr.rel (0) target = $region21
    $region20: #{tpu_custom_call.1} parent=1 // pred_region
      %29 = dma.done [#allocation3], 128
    $region21: #{tpu_custom_call.1} parent=1 // pred_fallthru
      _
    %v30 = vld [vmem:[%s0] sm:$0xff]
    %v32 = vcombine.high %v30, %v30
    %v34 = vunpack.c.l.s4 1966171168
    %v35 = vunpack.c.0.s8 %v34
    %v36 = vlaneseq
    %v37 = vshrl.u32 %v36, 7
    %v38 = vsub.s32 %v35, %v37
    %v39 = vrot.slane %v30, %v38
    %v41 = vunpack.c.l.s4 1966171168
    %v42 = vunpack.c.0.s8 %v41
    %v43 = vlaneseq
    %v44 = vshrl.u32 %v43, 7
    %v45 = vsub.s32 %v42, %v44
    %v46 = vrot.slane %v32, %v45
    %v47 = vcombine.high %v39, %v39
    %v48 = vcombine.high %v46, %v46
    %v50 = vunpack.c.l.s4 1966171168
    %v51 = vunpack.c.0.s8 %v50
    %v52 = vlaneseq
    %v53 = vshrl.u32 %v52, 7
    %v54 = vsub.s32 %v51, %v53
    %v55 = vrot.slane %v39, %v54
    %v57 = vunpack.c.l.s4 1966171168
    %v58 = vunpack.c.0.s8 %v57
    %v59 = vlaneseq
    %v60 = vshrl.u32 %v59, 7
    %v61 = vsub.s32 %v58, %v60
    %v62 = vrot.slane %v46, %v61
    %v64 = vunpack.c.l.s4 1966171168
    %v65 = vunpack.c.0.s8 %v64
    %v66 = vlaneseq
    %v67 = vshrl.u32 %v66, 7
    %v68 = vsub.s32 %v65, %v67
    %v69 = vrot.slane %v47, %v68
    %v71 = vunpack.c.l.s4 1966171168
    %v72 = vunpack.c.0.s8 %v71
    %v73 = vlaneseq
    %v74 = vshrl.u32 %v73, 7
    %v75 = vsub.s32 %v72, %v74
    %v76 = vrot.slane %v48, %v75
    %v77 = vcombine.high %v55, %v55
    %v78 = vcombine.high %v62, %v62
    %v79 = vcombine.high %v69, %v69
    %v80 = vcombine.high %v76, %v76
    %v81 = vlaneseq
    %v82 = vshrl.u32 %v81, 7
    %v83 = vsub.s32 0, %v82
    %v84 = vrot.slane %v55, %v83
    %v85 = vlaneseq
    %v86 = vshrl.u32 %v85, 7
    %v87 = vsub.s32 0, %v86
    %v88 = vrot.slane %v69, %v87
    %v89 = vlaneseq
    %v90 = vshrl.u32 %v89, 7
    %v91 = vsub.s32 0, %v90
    %v92 = vrot.slane %v77, %v91
    %v93 = vlaneseq
    %v94 = vshrl.u32 %v93, 7
    %v95 = vsub.s32 0, %v94
    %v96 = vrot.slane %v79, %v95
    %v97 = vlaneseq
    %v98 = vshrl.u32 %v97, 7
    %v99 = vsub.s32 0, %v98
    %v100 = vrot.slane %v62, %v99
    %v101 = vlaneseq
    %v102 = vshrl.u32 %v101, 7
    %v103 = vsub.s32 0, %v102
    %v104 = vrot.slane %v76, %v103
    %v105 = vlaneseq
    %v106 = vshrl.u32 %v105, 7
    %v107 = vsub.s32 0, %v106
    %v108 = vrot.slane %v78, %v107
    %v109 = vlaneseq
    %v110 = vshrl.u32 %v109, 7
    %v111 = vsub.s32 0, %v110
    %v112 = vrot.slane %v80, %v111
    %v121 = vmul.f32 %v84, %v30
    %v122 = vmul.f32 %v88, %v30
    %v123 = vmul.f32 %v92, %v30
    %v124 = vmul.f32 %v96, %v30
    %v125 = vmul.f32 %v100, %v30
    %v126 = vmul.f32 %v104, %v30
    %v127 = vmul.f32 %v108, %v30
    %v128 = vmul.f32 %v112, %v30
    %v129 = vld [vmem:[#allocation2] sm:$0xff]
    %v130 = vld [vmem:[%s2] sm:$0xff]
    %vm131 = vcmask 523264
    %v133 = vsel %vm131, %v130, 0
    %135 = vmatprep.subr.mxu0 0.0
    %136 = vmatpush1.msra.mxu0 %v121
    %137 = vmatprep.subr.mxu0 0.0
    %138 = vmatpush1.msra.mxu0 %v122
    %139 = vmatprep.subr.mxu0 0.0
    %140 = vmatpush1.msra.mxu0 %v123
    %141 = vmatprep.subr.mxu0 0.0
    %142 = vmatpush1.msra.mxu0 %v124
    %143 = vmatprep.subr.mxu0 0.0
    %144 = vmatpush1.msra.mxu0 %v125
    %145 = vmatprep.subr.mxu0 0.0
    %146 = vmatpush1.msra.mxu0 %v126
    %147 = vmatprep.subr.mxu0 0.0
    %148 = vmatpush1.msra.mxu0 %v127
    %149 = vmatprep.subr.mxu0 0.0
    %150 = vmatpush1.msra.mxu0 %v128
    %151 = vmatprep.subr.mxu0 0.0
    %152 = vmatpush1.msra.mxu0 0.0
    %153 = vmatprep.subr.mxu0 0.0
    %154 = vmatpush1.msra.mxu0 0.0
    %155 = vmatprep.subr.mxu0 0.0
    %156 = vmatpush1.msra.mxu0 0.0
    %157 = vmatprep.subr.mxu0 0.0
    %158 = vmatpush1.msra.mxu0 0.0
    %159 = vmatprep.subr.mxu0 0.0
    %160 = vmatpush1.msra.mxu0 0.0
    %161 = vmatprep.subr.mxu0 0.0
    %162 = vmatpush1.msra.mxu0 0.0
    %163 = vmatprep.subr.mxu0 0.0
    %164 = vmatpush1.msra.mxu0 0.0
    %165 = vmatprep.subr.mxu0 0.0
    %166 = vmatpush1.msra.mxu0 0.0
    %167 = vmatprep.subr.mxu0 0.0
    %168 = vmatpush1.msra.mxu0 0.0
    %169 = vmatprep.subr.mxu0 0.0
    %170 = vmatpush1.msra.mxu0 0.0
    %171 = vmatprep.subr.mxu0 0.0
    %172 = vmatpush1.msra.mxu0 0.0
    %173 = vmatprep.subr.mxu0 0.0
    %174 = vmatpush1.msra.mxu0 0.0
    %175 = vmatprep.subr.mxu0 0.0
    %176 = vmatpush1.msra.mxu0 0.0
    %177 = vmatprep.subr.mxu0 0.0
    %178 = vmatpush1.msra.mxu0 0.0
    %179 = vmatprep.subr.mxu0 0.0
    %180 = vmatpush1.msra.mxu0 0.0
    %181 = vmatprep.subr.mxu0 0.0
    %182 = vmatpush1.msra.mxu0 0.0
    %183 = vmatprep.subr.mxu0 0.0
    %184 = vmatpush1.msra.mxu0 0.0
    %185 = vmatprep.subr.mxu0 0.0
    %186 = vmatpush1.msra.mxu0 0.0
    %187 = vmatprep.subr.mxu0 0.0
    %188 = vmatpush1.msra.mxu0 0.0
    %189 = vmatprep.subr.mxu0 0.0
    %190 = vmatpush1.msra.mxu0 0.0
    %191 = vmatprep.subr.mxu0 0.0
    %192 = vmatpush1.msra.mxu0 0.0
    %193 = vmatprep.subr.mxu0 0.0
    %194 = vmatpush1.msra.mxu0 0.0
    %195 = vmatprep.subr.mxu0 0.0
    %196 = vmatpush1.msra.mxu0 0.0
    %197 = vmatprep.subr.mxu0 0.0
    %198 = vmatpush1.msra.mxu0 0.0
    %199 = vmatprep.mubr.f32.mxu0 0.0
    %200 = vmatmul.mubr.f32.gmra.mrb[0].mxu0 %v133
    %v201 = vpop.f32.mrb[0].mxu0
    %v202 = vadd.f32 0.0, %v201
    %v203 = vpop.f32.mrb[0].mxu0
    %204 = vdwg.mxu0
    %vm205 = vcmask 64512
    %v207 = vsel %vm205, %v129, 0
    %209 = vmatprep.subr.mxu0 0.0
    %210 = vmatpush1.msra.mxu0 %v30
    %211 = vmatprep.subr.mxu0 0.0
    %212 = vmatpush1.msra.mxu0 0.0
    %213 = vmatprep.subr.mxu0 0.0
    %214 = vmatpush1.msra.mxu0 0.0
    %215 = vmatprep.subr.mxu0 0.0
    %216 = vmatpush1.msra.mxu0 0.0
    %217 = vmatprep.subr.mxu0 0.0
    %218 = vmatpush1.msra.mxu0 0.0
    %219 = vmatprep.subr.mxu0 0.0
    %220 = vmatpush1.msra.mxu0 0.0
    %221 = vmatprep.subr.mxu0 0.0
    %222 = vmatpush1.msra.mxu0 0.0
    %223 = vmatprep.subr.mxu0 0.0
    %224 = vmatpush1.msra.mxu0 0.0
    %225 = vmatprep.subr.mxu0 0.0
    %226 = vmatpush1.msra.mxu0 0.0
    %227 = vmatprep.subr.mxu0 0.0
    %228 = vmatpush1.msra.mxu0 0.0
    %229 = vmatprep.subr.mxu0 0.0
    %230 = vmatpush1.msra.mxu0 0.0
    %231 = vmatprep.subr.mxu0 0.0
    %232 = vmatpush1.msra.mxu0 0.0
    %233 = vmatprep.subr.mxu0 0.0
    %234 = vmatpush1.msra.mxu0 0.0
    %235 = vmatprep.subr.mxu0 0.0
    %236 = vmatpush1.msra.mxu0 0.0
    %237 = vmatprep.subr.mxu0 0.0
    %238 = vmatpush1.msra.mxu0 0.0
    %239 = vmatprep.subr.mxu0 0.0
    %240 = vmatpush1.msra.mxu0 0.0
    %241 = vmatprep.subr.mxu0 0.0
    %242 = vmatpush1.msra.mxu0 0.0
    %243 = vmatprep.subr.mxu0 0.0
    %244 = vmatpush1.msra.mxu0 0.0
    %245 = vmatprep.subr.mxu0 0.0
    %246 = vmatpush1.msra.mxu0 0.0
    %247 = vmatprep.subr.mxu0 0.0
    %248 = vmatpush1.msra.mxu0 0.0
    %249 = vmatprep.subr.mxu0 0.0
    %250 = vmatpush1.msra.mxu0 0.0
    %251 = vmatprep.subr.mxu0 0.0
    %252 = vmatpush1.msra.mxu0 0.0
    %253 = vmatprep.subr.mxu0 0.0
    %254 = vmatpush1.msra.mxu0 0.0
    %255 = vmatprep.subr.mxu0 0.0
    %256 = vmatpush1.msra.mxu0 0.0
    %257 = vmatprep.subr.mxu0 0.0
    %258 = vmatpush1.msra.mxu0 0.0
    %259 = vmatprep.subr.mxu0 0.0
    %260 = vmatpush1.msra.mxu0 0.0
    %261 = vmatprep.subr.mxu0 0.0
    %262 = vmatpush1.msra.mxu0 0.0
    %263 = vmatprep.subr.mxu0 0.0
    %264 = vmatpush1.msra.mxu0 0.0
    %265 = vmatprep.subr.mxu0 0.0
    %266 = vmatpush1.msra.mxu0 0.0
    %267 = vmatprep.subr.mxu0 0.0
    %268 = vmatpush1.msra.mxu0 0.0
    %269 = vmatprep.subr.mxu0 0.0
    %270 = vmatpush1.msra.mxu0 0.0
    %271 = vmatprep.subr.mxu0 0.0
    %272 = vmatpush1.msra.mxu0 0.0
    %273 = vmatprep.mubr.f32.mxu0 0.0
    %274 = vmatmul.mubr.f32.gmra.mrb[0].mxu0 %v207
    %v275 = vpop.f32.mrb[0].mxu0
    %v276 = vadd.f32 %v202, %v275
    %v277 = vpop.f32.mrb[0].mxu0
    %278 = vdwg.mxu0
    %v279 = vld [vmem:[%s3] sm:$0xff]
    %281 = vset.pattern.permute.xlu0 0
    %282 = vperm.xlu0 %281, %v279
    %v283 = vpop.permute.xlu0 %282
    %v285 = vadd.f32 %v276, %v283
    %286 = vst.msk [vmem:[#allocation5] sm:$0xff] %vm205, %v285
    // Predicated region
    $region22: #{tpu_custom_call.1} parent=1 // pred_check
      _
    $region23: #{tpu_custom_call.1} parent=1 // pred_check_branch
      %288 = sbr.rel (0) target = $region25
    $region24: #{tpu_custom_call.1} parent=1 // pred_region
      %s290 = ssub.s32 128, 128
      %291 = vsyncadd [#allocation4], %s290
      %s293 = sshll.u32 [#allocation5], 4
      %s294 = int_to_ptr.vmem [resolvable:$true] %s293
      %296 = dma.vmem_to_hbm [thread:$0]  %s294, 128, %s4, [#allocation4]
    $region25: #{tpu_custom_call.1} parent=1 // pred_fallthru
      _
    // Predicated region
    $region26: #{tpu_custom_call.1} parent=1 // pred_check
      _
    $region27: #{tpu_custom_call.1} parent=1 // pred_check_branch
      %298 = sbr.rel (0) target = $region29
    $region28: #{tpu_custom_call.1} parent=1 // pred_region
      %299 = dma.done [#allocation4], 128
    $region29: #{tpu_custom_call.1} parent=1 // pred_fallthru
      _
    %300 = vsyncpa [#allocation3], 1
    %301 = vsyncpa [#allocation4], 1

</llo_original>
